<compile_context>
chip_gen: v5e
topology: v5e:2x2
jax: 0.10.0
libtpu: 0.0.40
codegen_flags: <defaults>
</compile_context>

<pallas_src>
import jax
import jax.numpy as jnp
from jax.experimental import pallas as pl
from jax.experimental.pallas import tpu as pltpu

_BN_EPS = 1e-5  # nn.BatchNorm1d default eps


def _objectness_mlp_kernel(x_ref, w1, b1, w2, b2, w3, b3, w4, b4, out_ref):
    """One (batch, position-tile) block of the objectness MLP.

    x_ref:   (1, C0, TILE_N) bf16  channels on sublanes, positions on lanes
    w*:      (Cout, Cin)     bf16  BN-folded 1x1 conv weights (VMEM-resident)
    b*:      (Cout, 1)       f32   BN-folded biases
    out_ref: (1, 1, TILE_N)  f32
    """
    x = x_ref[0]  # (C0, TILE_N), bf16

    def conv_bn_relu(h, w_r, b_r):
        # bf16 x bf16 on the MXU with f32 accumulate; bias + ReLU on the VPU;
        # back to bf16 so the next layer stays on the native MXU path.
        y = jnp.dot(w_r[...], h, preferred_element_type=jnp.float32) + b_r[...]
        return jnp.maximum(y, 0.0).astype(w_r.dtype)

    h = conv_bn_relu(x, w1, b1)
    h = conv_bn_relu(h, w2, b2)
    h = conv_bn_relu(h, w3, b3)
    y = jnp.dot(w4[...], h, preferred_element_type=jnp.float32) + b4[...]
    out_ref[0] = y.astype(out_ref.dtype)


def _round_up(x, m):
    return (x + m - 1) // m * m


def _choose_tile_n(N, B, *, max_tile=4096, min_tile=256):
    """Largest lane-aligned position tile such that
       * the ~0.35 us per-grid-step overhead is amortised (thousands of
         positions per step when N allows it),
       * a bf16 (128, tile) feature block (double-buffered) plus f32 layer
         intermediates stay well under the smallest scoped-VMEM default
         (~6-8 MiB total at tile=4096, vs 16 MiB on v5e / 32 MiB on v6e/v7x),
       * the grid keeps >= 2 steps over the "parallel" axes so both v7x
         TensorCores get work (harmless on single-TC v5e/v6e).
    """
    tile = min(max_tile, _round_up(N, 128))
    if B == 1 and pl.cdiv(_round_up(N, 128), tile) < 2 and tile > min_tile:
        tile = max(min_tile, _round_up(pl.cdiv(N, 2), 128))
    return tile


def objectness_mlp_forward(features, folded_params, *, tile_n=None):
    """features: (B, C0, N) channel-first -> objectness logits (B, N)."""
    B, C0, N = features.shape
    if tile_n is None:
        tile_n = _choose_tile_n(N, B)
    n_tiles = pl.cdiv(N, tile_n)
    n_pad = n_tiles * tile_n

    # bf16 feature blocks halve the dominant HBM read; pad ragged N with zeros
    # (padded-tail logits are garbage through the bias chain and are sliced
    # off below before any consumer sees them).
    x = features.astype(jnp.bfloat16)
    if n_pad != N:
        x = jnp.pad(x, ((0, 0), (0, 0), (0, n_pad - N)))

    # Weights -> bf16 for the MXU, biases stay f32 for the accumulate.
    params = tuple(
        p.astype(jnp.bfloat16) if i % 2 == 0 else p.astype(jnp.float32)
        for i, p in enumerate(folded_params))
    c_out = params[6].shape[0]  # = 1

    def const_spec(arr):
        # Whole array, same block every grid step -> stays resident in VMEM.
        return pl.BlockSpec(arr.shape, lambda b, n: (0,) * arr.ndim)

    in_specs = [pl.BlockSpec((1, C0, tile_n), lambda b, n: (b, 0, n))]
    in_specs += [const_spec(p) for p in params]

    out = pl.pallas_call(
        _objectness_mlp_kernel,
        out_shape=jax.ShapeDtypeStruct((B, c_out, n_pad), jnp.float32),
        grid=(B, n_tiles),
        in_specs=in_specs,
        out_specs=pl.BlockSpec((1, c_out, tile_n), lambda b, n: (b, 0, n)),
        compiler_params=pltpu.CompilerParams(
            dimension_semantics=("parallel", "parallel")),
    )(x, *params)

    # Drop padded tail + singleton channel; downstream pickup wants (B, N).
    return out[:, 0, :N]


def fold_batchnorm(raw_params):
    """Fold eval-mode BN1d into the preceding 1x1 conv; returns a flat tuple.

    raw_params: [(w, b, gamma, beta, mean, var)] * 3 + [(w_final, b_final)]
    with w of shape (Cout, Cin) and vectors of shape (Cout,).
    """
    folded = []
    for (w, b, g, beta, mean, var) in raw_params[:-1]:
        scale = g * jax.lax.rsqrt(var + _BN_EPS)
        folded.append(w * scale[:, None])                       # (Cout, Cin)
        folded.append(((b - mean) * scale + beta)[:, None])     # (Cout, 1)
    w, b = raw_params[-1]
    folded.append(w)
    folded.append(b[:, None])
    return tuple(folded)


def make_raw_params(key, in_channels=128, conv_ratio=(0.5, 0.5, 1.0)):
    """Synthetic eval-mode params mirroring _build_objectness_mlps."""
    conv_channels = []
    prev = in_channels
    for k in conv_ratio:
        out_ch = int(prev * k)
        conv_channels.append(out_ch)
        prev = out_ch

    keys = iter(jax.random.split(key, 64))

    def nrm(shape, scale=0.1):
        return scale * jax.random.normal(next(keys), shape, dtype=jnp.float32)

    raw = []
    prev = in_channels
    for out_ch in conv_channels:
        raw.append((
            nrm((out_ch, prev)),                # conv weight (Cout, Cin)
            nrm((out_ch,)),                     # conv bias
            1.0 + nrm((out_ch,)),               # BN gamma
            nrm((out_ch,)),                     # BN beta
            nrm((out_ch,)),                     # BN running_mean
            0.5 + jnp.abs(nrm((out_ch,))),      # BN running_var > 0
        ))
        prev = out_ch
    raw.append((nrm((1, prev)), nrm((1,))))     # final nn.Conv1d(prev, 1, 1)
    return raw


def reference_objectness(features, raw_params):
    """Pure-JAX f32 eval-mode reference of self.obj_mlps(features)."""
    h = features.astype(jnp.float32)  # (B, C, N)
    for (w, b, g, beta, mean, var) in raw_params[:-1]:
        y = jnp.einsum('oi,bin->bon', w, h) + b[:, None]
        y = ((y - mean[:, None]) / jnp.sqrt(var[:, None] + _BN_EPS)
             * g[:, None] + beta[:, None])
        h = jnp.maximum(y, 0.0)
    w, b = raw_params[-1]
    return jnp.einsum('oi,bin->bon', w, h) + b[:, None]


def reference_objectness_folded_bf16(features, folded_params):
    """Pure-JAX reference that mirrors the kernel's bf16/f32 numerics exactly."""
    h = features.astype(jnp.bfloat16)
    ws = [folded_params[i].astype(jnp.bfloat16) for i in (0, 2, 4, 6)]
    bs = [folded_params[i].astype(jnp.float32) for i in (1, 3, 5, 7)]
    for w, b in zip(ws[:3], bs[:3]):
        y = jnp.einsum('oc,bcn->bon', w, h,
                       preferred_element_type=jnp.float32) + b[None]
        h = jnp.maximum(y, 0.0).astype(jnp.bfloat16)
    y = jnp.einsum('oc,bcn->bon', ws[3], h,
                   preferred_element_type=jnp.float32) + bs[3][None]
    return y[:, 0, :]


def os_ffps_pickup(locations, features, obj_logits, num_candidate_anchors):
    """sigmoid + top-k candidate pickup of the OS-FFPS branch (plain JAX)."""
    obj_scores = jax.nn.sigmoid(obj_logits)                             # (B, N)
    top_scores, pickup_idx = jax.lax.top_k(obj_scores, num_candidate_anchors)
    pickup_points = jnp.take_along_axis(
        locations, pickup_idx[:, :, None], axis=1)                      # (B, K, 3)
    pickup_features = jnp.take_along_axis(
        features, pickup_idx[:, None, :], axis=2)                       # (B, C, K)
    # TODO(synk): furthest_point_sample / kmeans anchor selection has no clean
    # dense Pallas equivalent; the final anchor set downstream of the pickup
    # is not computed here.
    return pickup_points, pickup_features, top_scores, pickup_idx


if __name__ == "__main__":
    key = jax.random.PRNGKey(0)
    k_feat, k_loc, k_par = jax.random.split(key, 3)

    in_channels = 128            # module default; MLP widths 128->64->32->32->1
    B, N = 2, 500                # ragged N (not a tile multiple) on purpose
    num_candidate_anchors = 64   # module default num_candidate_anchors

    # Module inputs: features (B, C, N) channel-first, locations (B, N, 3).
    features = jax.random.normal(k_feat, (B, in_channels, N), dtype=jnp.float32)
    locations = jax.random.normal(k_loc, (B, N, 3), dtype=jnp.float32)

    raw_params = make_raw_params(k_par, in_channels)
    folded_params = fold_batchnorm(raw_params)

    # Pallas kernel: objectness MLP over all positions.
    obj_logits = objectness_mlp_forward(features, folded_params)
    obj_logits = jax.block_until_ready(obj_logits)
    assert obj_logits.shape == (B, N), obj_logits.shape

    # (1) Tight plumbing check vs a pure-JAX reference with matched bf16/f32
    #     numerics (same BN fold, same casts, f32 accumulate).
    ref_bf16 = reference_objectness_folded_bf16(features, folded_params)
    assert jnp.allclose(obj_logits, ref_bf16, atol=2e-3, rtol=2e-3), \
        "mismatch vs bf16-matched reference"

    # (2) Semantic check vs the unfolded f32 eval-mode module reference; the
    #     looser tolerance covers bf16 feature/weight rounding over 4 layers.
    ref_f32 = reference_objectness(features, raw_params)[:, 0, :]
    assert jnp.allclose(obj_logits, ref_f32, atol=1e-1, rtol=1e-1), \
        "mismatch vs f32 module reference"

    # Rest of the OS-FFPS branch (host-side, data-dependent selection).
    pickup_points, pickup_features, _, _ = os_ffps_pickup(
        locations, features, obj_logits, num_candidate_anchors)
    jax.block_until_ready((pickup_points, pickup_features))
    assert pickup_points.shape == (B, num_candidate_anchors, 3)
    assert pickup_features.shape == (B, in_channels, num_candidate_anchors)

    print("KERNEL_OK")
</pallas_src>

<mosaic_0001>
module attributes {stable_mosaic.version = 11 : i64} {
  func.func @_objectness_mlp_kernel(%arg0: i32, %arg1: i32, %arg2: memref<1x128x512xbf16, #tpu.memory_space<vmem>>, %arg3: memref<64x128xbf16, #tpu.memory_space<vmem>>, %arg4: memref<64x1xf32, #tpu.memory_space<vmem>>, %arg5: memref<32x64xbf16, #tpu.memory_space<vmem>>, %arg6: memref<32x1xf32, #tpu.memory_space<vmem>>, %arg7: memref<32x32xbf16, #tpu.memory_space<vmem>>, %arg8: memref<32x1xf32, #tpu.memory_space<vmem>>, %arg9: memref<1x32xbf16, #tpu.memory_space<vmem>>, %arg10: memref<1x1xf32, #tpu.memory_space<vmem>>, %arg11: memref<1x1x512xf32, #tpu.memory_space<vmem>>) attributes {dimension_semantics = [#tpu.dimension_semantics<parallel>, #tpu.dimension_semantics<parallel>], iteration_bounds = array<i64: 2, 1>, scalar_prefetch = 0 : i64, scratch_operands = 0 : i64, tpu.core_type = #tpu.core_type<tc>, window_params = [{transform_indices = @transform_0, window_bounds = array<i64: 1, 128, 512>}, {pipeline_mode = #tpu.pipeline_mode<synchronous>, transform_indices = @transform_1, window_bounds = array<i64: 64, 128>}, {pipeline_mode = #tpu.pipeline_mode<synchronous>, transform_indices = @transform_2, window_bounds = array<i64: 64, 1>}, {pipeline_mode = #tpu.pipeline_mode<synchronous>, transform_indices = @transform_3, window_bounds = array<i64: 32, 64>}, {pipeline_mode = #tpu.pipeline_mode<synchronous>, transform_indices = @transform_4, window_bounds = array<i64: 32, 1>}, {pipeline_mode = #tpu.pipeline_mode<synchronous>, transform_indices = @transform_5, window_bounds = array<i64: 32, 32>}, {pipeline_mode = #tpu.pipeline_mode<synchronous>, transform_indices = @transform_6, window_bounds = array<i64: 32, 1>}, {pipeline_mode = #tpu.pipeline_mode<synchronous>, transform_indices = @transform_7, window_bounds = array<i64: 1, 32>}, {pipeline_mode = #tpu.pipeline_mode<synchronous>, transform_indices = @transform_8, window_bounds = array<i64: 1, 1>}, {transform_indices = @transform_9, window_bounds = array<i64: 1, 1, 512>}]} {
    %c0 = arith.constant 0 : index
    %c0_0 = arith.constant 0 : index
    %c0_1 = arith.constant 0 : index
    %0 = vector.load %arg2[%c0, %c0_0, %c0_1] : memref<1x128x512xbf16, #tpu.memory_space<vmem>>, vector<1x128x512xbf16>
    %1 = vector.shape_cast %0 : vector<1x128x512xbf16> to vector<128x512xbf16>
    %c0_2 = arith.constant 0 : index
    %c0_3 = arith.constant 0 : index
    %2 = vector.load %arg3[%c0_2, %c0_3] : memref<64x128xbf16, #tpu.memory_space<vmem>>, vector<64x128xbf16>
    %cst = arith.constant dense<0.000000e+00> : vector<64x512xf32>
    %3 = tpu.matmul %2, %1, %cst {dimension_numbers = #tpu.dot_dimension_numbers<[1], [0], [0], [1], [0, 0, 1, 1], [], []>} : vector<64x128xbf16>, vector<128x512xbf16>, vector<64x512xf32> -> vector<64x512xf32>
    %c0_4 = arith.constant 0 : index
    %c0_5 = arith.constant 0 : index
    %4 = vector.load %arg4[%c0_4, %c0_5] : memref<64x1xf32, #tpu.memory_space<vmem>>, vector<64x1xf32>
    %5 = vector.broadcast %4 : vector<64x1xf32> to vector<64x512xf32>
    %6 = arith.addf %3, %5 : vector<64x512xf32>
    %cst_6 = arith.constant 0.000000e+00 : f32
    %7 = vector.broadcast %cst_6 : f32 to vector<64x512xf32>
    %8 = arith.maximumf %6, %7 : vector<64x512xf32>
    %9 = arith.truncf %8 : vector<64x512xf32> to vector<64x512xbf16>
    %c0_7 = arith.constant 0 : index
    %c0_8 = arith.constant 0 : index
    %10 = vector.load %arg5[%c0_7, %c0_8] : memref<32x64xbf16, #tpu.memory_space<vmem>>, vector<32x64xbf16>
    %cst_9 = arith.constant dense<0.000000e+00> : vector<32x512xf32>
    %11 = tpu.matmul %10, %9, %cst_9 {dimension_numbers = #tpu.dot_dimension_numbers<[1], [0], [0], [1], [0, 0, 1, 1], [], []>} : vector<32x64xbf16>, vector<64x512xbf16>, vector<32x512xf32> -> vector<32x512xf32>
    %c0_10 = arith.constant 0 : index
    %c0_11 = arith.constant 0 : index
    %12 = vector.load %arg6[%c0_10, %c0_11] : memref<32x1xf32, #tpu.memory_space<vmem>>, vector<32x1xf32>
    %13 = vector.broadcast %12 : vector<32x1xf32> to vector<32x512xf32>
    %14 = arith.addf %11, %13 : vector<32x512xf32>
    %cst_12 = arith.constant 0.000000e+00 : f32
    %15 = vector.broadcast %cst_12 : f32 to vector<32x512xf32>
    %16 = arith.maximumf %14, %15 : vector<32x512xf32>
    %17 = arith.truncf %16 : vector<32x512xf32> to vector<32x512xbf16>
    %c0_13 = arith.constant 0 : index
    %c0_14 = arith.constant 0 : index
    %18 = vector.load %arg7[%c0_13, %c0_14] : memref<32x32xbf16, #tpu.memory_space<vmem>>, vector<32x32xbf16>
    %cst_15 = arith.constant dense<0.000000e+00> : vector<32x512xf32>
    %19 = tpu.matmul %18, %17, %cst_15 {dimension_numbers = #tpu.dot_dimension_numbers<[1], [0], [0], [1], [0, 0, 1, 1], [], []>} : vector<32x32xbf16>, vector<32x512xbf16>, vector<32x512xf32> -> vector<32x512xf32>
    %c0_16 = arith.constant 0 : index
    %c0_17 = arith.constant 0 : index
    %20 = vector.load %arg8[%c0_16, %c0_17] : memref<32x1xf32, #tpu.memory_space<vmem>>, vector<32x1xf32>
    %21 = vector.broadcast %20 : vector<32x1xf32> to vector<32x512xf32>
    %22 = arith.addf %19, %21 : vector<32x512xf32>
    %cst_18 = arith.constant 0.000000e+00 : f32
    %23 = vector.broadcast %cst_18 : f32 to vector<32x512xf32>
    %24 = arith.maximumf %22, %23 : vector<32x512xf32>
    %25 = arith.truncf %24 : vector<32x512xf32> to vector<32x512xbf16>
    %c0_19 = arith.constant 0 : index
    %c0_20 = arith.constant 0 : index
    %26 = vector.load %arg9[%c0_19, %c0_20] : memref<1x32xbf16, #tpu.memory_space<vmem>>, vector<1x32xbf16>
    %cst_21 = arith.constant dense<0.000000e+00> : vector<1x512xf32>
    %27 = tpu.matmul %26, %25, %cst_21 {dimension_numbers = #tpu.dot_dimension_numbers<[1], [0], [0], [1], [0, 0, 1, 1], [], []>} : vector<1x32xbf16>, vector<32x512xbf16>, vector<1x512xf32> -> vector<1x512xf32>
    %c0_22 = arith.constant 0 : index
    %c0_23 = arith.constant 0 : index
    %28 = vector.load %arg10[%c0_22, %c0_23] : memref<1x1xf32, #tpu.memory_space<vmem>>, vector<1x1xf32>
    %29 = vector.broadcast %28 : vector<1x1xf32> to vector<1x512xf32>
    %30 = arith.addf %27, %29 : vector<1x512xf32>
    %c0_24 = arith.constant 0 : index
    %c0_25 = arith.constant 0 : index
    %c0_26 = arith.constant 0 : index
    %31 = vector.load %arg11[%c0_24, %c0_25, %c0_26] : memref<1x1x512xf32, #tpu.memory_space<vmem>>, vector<1x1x512xf32>
    %32 = vector.shape_cast %31 : vector<1x1x512xf32> to vector<1x512xf32>
    %33 = vector.shape_cast %30 : vector<1x512xf32> to vector<1x1x512xf32>
    tpu.vector_store %arg11[%c0_24, %c0_25, %c0_26], %33 {strides = array<i32>} : memref<1x1x512xf32, #tpu.memory_space<vmem>>, vector<1x1x512xf32>,
    return
  }
  func.func @transform_0(%arg0: i32, %arg1: i32) -> (i32, i32, i32) {
    %c0_i32 = arith.constant 0 : i32
    %c0_i32_0 = arith.constant 0 : i32
    return %arg0, %c0_i32, %arg1 : i32, i32, i32
  }
  func.func @transform_1(%arg0: i32, %arg1: i32) -> (i32, i32) {
    %c0_i32 = arith.constant 0 : i32
    %c0_i32_0 = arith.constant 0 : i32
    %c0_i32_1 = arith.constant 0 : i32
    return %c0_i32, %c0_i32_0 : i32, i32
  }
  func.func @transform_2(%arg0: i32, %arg1: i32) -> (i32, i32) {
    %c0_i32 = arith.constant 0 : i32
    %c0_i32_0 = arith.constant 0 : i32
    %c0_i32_1 = arith.constant 0 : i32
    return %c0_i32, %c0_i32_0 : i32, i32
  }
  func.func @transform_3(%arg0: i32, %arg1: i32) -> (i32, i32) {
    %c0_i32 = arith.constant 0 : i32
    %c0_i32_0 = arith.constant 0 : i32
    %c0_i32_1 = arith.constant 0 : i32
    return %c0_i32, %c0_i32_0 : i32, i32
  }
  func.func @transform_4(%arg0: i32, %arg1: i32) -> (i32, i32) {
    %c0_i32 = arith.constant 0 : i32
    %c0_i32_0 = arith.constant 0 : i32
    %c0_i32_1 = arith.constant 0 : i32
    return %c0_i32, %c0_i32_0 : i32, i32
  }
  func.func @transform_5(%arg0: i32, %arg1: i32) -> (i32, i32) {
    %c0_i32 = arith.constant 0 : i32
    %c0_i32_0 = arith.constant 0 : i32
    %c0_i32_1 = arith.constant 0 : i32
    return %c0_i32, %c0_i32_0 : i32, i32
  }
  func.func @transform_6(%arg0: i32, %arg1: i32) -> (i32, i32) {
    %c0_i32 = arith.constant 0 : i32
    %c0_i32_0 = arith.constant 0 : i32
    %c0_i32_1 = arith.constant 0 : i32
    return %c0_i32, %c0_i32_0 : i32, i32
  }
  func.func @transform_7(%arg0: i32, %arg1: i32) -> (i32, i32) {
    %c0_i32 = arith.constant 0 : i32
    %c0_i32_0 = arith.constant 0 : i32
    %c0_i32_1 = arith.constant 0 : i32
    return %c0_i32, %c0_i32_0 : i32, i32
  }
  func.func @transform_8(%arg0: i32, %arg1: i32) -> (i32, i32) {
    %c0_i32 = arith.constant 0 : i32
    %c0_i32_0 = arith.constant 0 : i32
    %c0_i32_1 = arith.constant 0 : i32
    return %c0_i32, %c0_i32_0 : i32, i32
  }
  func.func @transform_9(%arg0: i32, %arg1: i32) -> (i32, i32, i32) {
    %c0_i32 = arith.constant 0 : i32
    %c0_i32_0 = arith.constant 0 : i32
    return %arg0, %c0_i32, %arg1 : i32, i32, i32
  }
}

</mosaic_0001>

<llo_original>
// kernel: tpu_custom_call.1
$region0: #{tpu_custom_call.1}
  #allocation0 [shape = 'u32[]', space=smem, size = 0x4, offset = 0x4, fixed_abs, tag = 'smem constant byte address 0x4 - core index']
  #allocation1 [shape = 'u32[72,128]{1,0:T(1,128)}', space=vmem, size = 0x9000, scoped, tag = 'internal scratch']
  #allocation2 [shape = 'f32[1,1]{1,0:T(1,128)S(1)}', space=vmem, size = 0x200, scoped, tag = 'scoped memory for tpu_custom_call.1']
  %s0 = inlined_call_operand.hbm [shape: bf16[2,128,512], index: 0, kind: input, shape index: {}]
  %s1 = inlined_call_operand.vmem [shape: bf16[64,128], index: 1, kind: input, shape index: {}]
  %s2 = inlined_call_operand.vmem [shape: f32[64,1], index: 2, kind: input, shape index: {}]
  %s3 = inlined_call_operand.vmem [shape: bf16[32,64], index: 3, kind: input, shape index: {}]
  %s4 = inlined_call_operand.vmem [shape: f32[32,1], index: 4, kind: input, shape index: {}]
  %s5 = inlined_call_operand.vmem [shape: bf16[32,32], index: 5, kind: input, shape index: {}]
  %s6 = inlined_call_operand.vmem [shape: f32[32,1], index: 6, kind: input, shape index: {}]
  %s7 = inlined_call_operand.vmem [shape: bf16[1,32], index: 7, kind: input, shape index: {}]
  %s8 = inlined_call_operand.<no memory space> [shape: f32[1,1], index: 8, kind: input, shape index: {}]
  %s9 = inlined_call_operand.hbm [shape: f32[2,1,512], index: 9, kind: output, shape index: {}]
  %s10 = sld [smem:[#allocation0]]
  $region73: #{tpu_custom_call.1} parent=0
    _
  %s12 = ssub.s32 1, %s10
  %s13 = scalar_select 0, %s12, %s10
  %v14 = vstv %s8
  %15 = vst [vmem:[#allocation2] sm:$0x1] %v14
  $region1: #{tpu_custom_call.1} parent=0
    #allocation3 [shape = 'u8[262144]{0}', space=vmem, size = 0x40000, scoped, tag = 'input window, operand 0']
    #allocation4 [shape = 's32[2]{0}', space=sflag, size = 0x8, scoped, tag = 'scoped memory for tpu_custom_call.1']
    #allocation5 [shape = 's32[2]{0}', space=sflag, size = 0x8, scoped, tag = 'scoped memory for tpu_custom_call.1']
    #allocation6 [shape = 'u8[4096]{0}', space=vmem, size = 0x1000, scoped, tag = 'output window, operand 0']
    %16 = vsyncpa [#allocation4], 0
    %s17 = scalar_lea.sflag [#allocation4], 1
    %18 = vsyncpa %s17, 0
    %19 = vsyncpa [#allocation5], 0
    %s20 = scalar_lea.sflag [#allocation5], 1
    %21 = vsyncpa %s20, 0
    loop: start=0, step=1, limit=4
    $region2: #{tpu_custom_call.1} parent=1 // loop_pre_header
      _
    $region3: #{tpu_custom_call.1} parent=1 // loop_header
      %s23 = sphi 0, %s27
      %p24 = scmp.ge.s32.totalorder %s23, 4
      %s30 = sphi 0, %s42
      %s31 = sphi 0, %s38
      %s32 = sphi 0, %s30
      %s33 = sphi 0, %s31
      %s34 = sphi 0, %s32
      %s35 = sphi 0, %s33
      %s47 = sphi 0, %s49
      %s50 = sphi 0, %s47
      %s51 = sphi 0, %s50
      %s67 = sphi 0, %s51
      %s71 = sphi 0, %s71
      %s73 = sphi 0, %s71
      %s74 = sphi 0, %s73
      %s88 = sphi 0, %s74
      %s92 = sphi 0, %s92
      %s94 = sphi 0, %s92
      %s95 = sphi 0, %s94
      %s109 = sphi 0, %s95
      %s113 = sphi 0, %s113
      %s115 = sphi 0, %s113
      %s116 = sphi 0, %s115
      %s130 = sphi 0, %s116
      %s134 = sphi 0, %s134
      %s136 = sphi 0, %s134
      %s137 = sphi 0, %s136
      %s151 = sphi 0, %s137
      %s155 = sphi 0, %s155
      %s157 = sphi 0, %s155
      %s158 = sphi 0, %s157
      %s172 = sphi 0, %s158
      %s176 = sphi 0, %s176
      %s178 = sphi 0, %s176
      %s179 = sphi 0, %s178
      %s193 = sphi 0, %s179
      %s197 = sphi 0, %s197
      %s199 = sphi 0, %s197
      %s200 = sphi 0, %s199
      %s214 = sphi 0, %s200
      %s218 = sphi 0, %s218
      %s220 = sphi 0, %s218
      %s221 = sphi 0, %s220
      %s235 = sphi 0, %s221
      %s243 = sphi 0, %s245
      %s246 = sphi 0, %s243
      %s247 = sphi 0, %s246
      %s263 = sphi 0, %s247
    $region4: #{tpu_custom_call.1} parent=1 // loop_header_branch
      %26 = sbr.rel (%p24) target = $region8
    $region5: #{tpu_custom_call.1} parent=1 // loop_body
      %s28 = ssub.s32 %s23, 1
      %s29 = ssub.s32 %s23, 2
      %s36 = sadd.s32 1, %s31
      %p37 = scmp.ge.s32.totalorder %s36, 1
      %s38 = scalar_select %p37, 0, %s36
      %s39 = sadd.s32 1, %s30
      %s40 = scalar_select %p37, %s39, %s30
      %p41 = scmp.ge.s32.totalorder %s40, 2
      %s42 = scalar_select %p41, 0, %s40
      %s43 = ssub.s32 %s30, %s42
      %s44 = ssub.s32 %s31, %s38
      %s45 = sor.u32 %s43, %s44
      %p46 = scmp.eq.s32.totalorder %s45, 0
      %s48 = sadd.s32 %s47, 1
      %s49 = scalar_select %p46, %s47, %s48
      %p52 = pneg %p46
      %p53 = scmp.eq.s32.totalorder %s23, 1
      %p54 = por %p52, %p53
      %p55 = scmp.ne.s32.totalorder %s47, %s50
      %p56 = scmp.eq.s32.totalorder %s23, 0
      %p57 = por %p55, %p56
      %p58 = scmp.ne.s32.totalorder %s47, %s50
      %p59 = scmp.eq.s32.totalorder %s28, 1
      %p60 = por %p58, %p59
      %p61 = scmp.ne.s32.totalorder %s50, %s51
      %p62 = scmp.eq.s32.totalorder %s28, 0
      %p63 = por %p61, %p62
      %p64 = scmp.ne.s32.totalorder %s50, %s51
      %p65 = scmp.eq.s32.totalorder %s29, 1
      %p66 = por %p64, %p65
      %p68 = scmp.ne.s32.totalorder %s51, %s67
      %p69 = scmp.eq.s32.totalorder %s29, 0
      %p70 = por %p68, %p69
      %s72 = sadd.s32 %s71, 1
      %p75 = scmp.eq.s32.totalorder %s23, 1
      %p76 = scmp.ne.s32.totalorder %s71, %s73
      %p77 = scmp.eq.s32.totalorder %s23, 0
      %p78 = por %p76, %p77
      %p79 = scmp.ne.s32.totalorder %s71, %s73
      %p80 = scmp.eq.s32.totalorder %s28, 1
      %p81 = por %p79, %p80
      %p82 = scmp.ne.s32.totalorder %s73, %s74
      %p83 = scmp.eq.s32.totalorder %s28, 0
      %p84 = por %p82, %p83
      %p85 = scmp.ne.s32.totalorder %s73, %s74
      %p86 = scmp.eq.s32.totalorder %s29, 1
      %p87 = por %p85, %p86
      %p89 = scmp.ne.s32.totalorder %s74, %s88
      %p90 = scmp.eq.s32.totalorder %s29, 0
      %p91 = por %p89, %p90
      %s93 = sadd.s32 %s92, 1
      %p96 = scmp.eq.s32.totalorder %s23, 1
      %p97 = scmp.ne.s32.totalorder %s92, %s94
      %p98 = scmp.eq.s32.totalorder %s23, 0
      %p99 = por %p97, %p98
      %p100 = scmp.ne.s32.totalorder %s92, %s94
      %p101 = scmp.eq.s32.totalorder %s28, 1
      %p102 = por %p100, %p101
      %p103 = scmp.ne.s32.totalorder %s94, %s95
      %p104 = scmp.eq.s32.totalorder %s28, 0
      %p105 = por %p103, %p104
      %p106 = scmp.ne.s32.totalorder %s94, %s95
      %p107 = scmp.eq.s32.totalorder %s29, 1
      %p108 = por %p106, %p107
      %p110 = scmp.ne.s32.totalorder %s95, %s109
      %p111 = scmp.eq.s32.totalorder %s29, 0
      %p112 = por %p110, %p111
      %s114 = sadd.s32 %s113, 1
      %p117 = scmp.eq.s32.totalorder %s23, 1
      %p118 = scmp.ne.s32.totalorder %s113, %s115
      %p119 = scmp.eq.s32.totalorder %s23, 0
      %p120 = por %p118, %p119
      %p121 = scmp.ne.s32.totalorder %s113, %s115
      %p122 = scmp.eq.s32.totalorder %s28, 1
      %p123 = por %p121, %p122
      %p124 = scmp.ne.s32.totalorder %s115, %s116
      %p125 = scmp.eq.s32.totalorder %s28, 0
      %p126 = por %p124, %p125
      %p127 = scmp.ne.s32.totalorder %s115, %s116
      %p128 = scmp.eq.s32.totalorder %s29, 1
      %p129 = por %p127, %p128
      %p131 = scmp.ne.s32.totalorder %s116, %s130
      %p132 = scmp.eq.s32.totalorder %s29, 0
      %p133 = por %p131, %p132
      %s135 = sadd.s32 %s134, 1
      %p138 = scmp.eq.s32.totalorder %s23, 1
      %p139 = scmp.ne.s32.totalorder %s134, %s136
      %p140 = scmp.eq.s32.totalorder %s23, 0
      %p141 = por %p139, %p140
      %p142 = scmp.ne.s32.totalorder %s134, %s136
      %p143 = scmp.eq.s32.totalorder %s28, 1
      %p144 = por %p142, %p143
      %p145 = scmp.ne.s32.totalorder %s136, %s137
      %p146 = scmp.eq.s32.totalorder %s28, 0
      %p147 = por %p145, %p146
      %p148 = scmp.ne.s32.totalorder %s136, %s137
      %p149 = scmp.eq.s32.totalorder %s29, 1
      %p150 = por %p148, %p149
      %p152 = scmp.ne.s32.totalorder %s137, %s151
      %p153 = scmp.eq.s32.totalorder %s29, 0
      %p154 = por %p152, %p153
      %s156 = sadd.s32 %s155, 1
      %p159 = scmp.eq.s32.totalorder %s23, 1
      %p160 = scmp.ne.s32.totalorder %s155, %s157
      %p161 = scmp.eq.s32.totalorder %s23, 0
      %p162 = por %p160, %p161
      %p163 = scmp.ne.s32.totalorder %s155, %s157
      %p164 = scmp.eq.s32.totalorder %s28, 1
      %p165 = por %p163, %p164
      %p166 = scmp.ne.s32.totalorder %s157, %s158
      %p167 = scmp.eq.s32.totalorder %s28, 0
      %p168 = por %p166, %p167
      %p169 = scmp.ne.s32.totalorder %s157, %s158
      %p170 = scmp.eq.s32.totalorder %s29, 1
      %p171 = por %p169, %p170
      %p173 = scmp.ne.s32.totalorder %s158, %s172
      %p174 = scmp.eq.s32.totalorder %s29, 0
      %p175 = por %p173, %p174
      %s177 = sadd.s32 %s176, 1
      %p180 = scmp.eq.s32.totalorder %s23, 1
      %p181 = scmp.ne.s32.totalorder %s176, %s178
      %p182 = scmp.eq.s32.totalorder %s23, 0
      %p183 = por %p181, %p182
      %p184 = scmp.ne.s32.totalorder %s176, %s178
      %p185 = scmp.eq.s32.totalorder %s28, 1
      %p186 = por %p184, %p185
      %p187 = scmp.ne.s32.totalorder %s178, %s179
      %p188 = scmp.eq.s32.totalorder %s28, 0
      %p189 = por %p187, %p188
      %p190 = scmp.ne.s32.totalorder %s178, %s179
      %p191 = scmp.eq.s32.totalorder %s29, 1
      %p192 = por %p190, %p191
      %p194 = scmp.ne.s32.totalorder %s179, %s193
      %p195 = scmp.eq.s32.totalorder %s29, 0
      %p196 = por %p194, %p195
      %s198 = sadd.s32 %s197, 1
      %p201 = scmp.eq.s32.totalorder %s23, 1
      %p202 = scmp.ne.s32.totalorder %s197, %s199
      %p203 = scmp.eq.s32.totalorder %s23, 0
      %p204 = por %p202, %p203
      %p205 = scmp.ne.s32.totalorder %s197, %s199
      %p206 = scmp.eq.s32.totalorder %s28, 1
      %p207 = por %p205, %p206
      %p208 = scmp.ne.s32.totalorder %s199, %s200
      %p209 = scmp.eq.s32.totalorder %s28, 0
      %p210 = por %p208, %p209
      %p211 = scmp.ne.s32.totalorder %s199, %s200
      %p212 = scmp.eq.s32.totalorder %s29, 1
      %p213 = por %p211, %p212
      %p215 = scmp.ne.s32.totalorder %s200, %s214
      %p216 = scmp.eq.s32.totalorder %s29, 0
      %p217 = por %p215, %p216
      %s219 = sadd.s32 %s218, 1
      %p222 = scmp.eq.s32.totalorder %s23, 1
      %p223 = scmp.ne.s32.totalorder %s218, %s220
      %p224 = scmp.eq.s32.totalorder %s23, 0
      %p225 = por %p223, %p224
      %p226 = scmp.ne.s32.totalorder %s218, %s220
      %p227 = scmp.eq.s32.totalorder %s28, 1
      %p228 = por %p226, %p227
      %p229 = scmp.ne.s32.totalorder %s220, %s221
      %p230 = scmp.eq.s32.totalorder %s28, 0
      %p231 = por %p229, %p230
      %p232 = scmp.ne.s32.totalorder %s220, %s221
      %p233 = scmp.eq.s32.totalorder %s29, 1
      %p234 = por %p232, %p233
      %p236 = scmp.ne.s32.totalorder %s221, %s235
      %p237 = scmp.eq.s32.totalorder %s29, 0
      %p238 = por %p236, %p237
      %s239 = ssub.s32 %s30, %s42
      %s240 = ssub.s32 %s31, %s38
      %s241 = sor.u32 %s239, %s240
      %p242 = scmp.eq.s32.totalorder %s241, 0
      %s244 = sadd.s32 %s243, 1
      %s245 = scalar_select %p242, %s243, %s244
      %p248 = pneg %p242
      %p249 = scmp.eq.s32.totalorder %s23, 1
      %p250 = por %p248, %p249
      %p251 = scmp.ne.s32.totalorder %s243, %s246
      %p252 = scmp.eq.s32.totalorder %s23, 0
      %p253 = por %p251, %p252
      %p254 = scmp.ne.s32.totalorder %s243, %s246
      %p255 = scmp.eq.s32.totalorder %s28, 1
      %p256 = por %p254, %p255
      %p257 = scmp.ne.s32.totalorder %s246, %s247
      %p258 = scmp.eq.s32.totalorder %s28, 0
      %p259 = por %p257, %p258
      %p260 = scmp.ne.s32.totalorder %s246, %s247
      %p261 = scmp.eq.s32.totalorder %s29, 1
      %p262 = por %p260, %p261
      %p264 = scmp.ne.s32.totalorder %s247, %s263
      %p265 = scmp.eq.s32.totalorder %s29, 0
      %p266 = por %p264, %p265
      %p267 = scmp.le.s32.totalorder 1, %s23
      %p268 = scmp.lt.s32.totalorder %s23, 3
      %p269 = pnand %p267, %p268
      %p270 = pneg %p269
      // Predicated region
      $region9: #{tpu_custom_call.1} parent=5 // pred_check
        _
      $region10: #{tpu_custom_call.1} parent=5 // pred_check_branch
        %272 = sbr.rel (%p269) target = $region12
      $region11: #{tpu_custom_call.1} parent=5 // pred_region
        %s273 = ssub.s32 %s23, 1
        // Predicated region
        $region13: #{tpu_custom_call.1} parent=11 // pred_check
          %p274 = pneg %p84
        $region14: #{tpu_custom_call.1} parent=11 // pred_check_branch
          %276 = sbr.rel (%p274) target = $region16
        $region15: #{tpu_custom_call.1} parent=11 // pred_region
          _
        $region16: #{tpu_custom_call.1} parent=11 // pred_fallthru
          _
        // Predicated region
        $region17: #{tpu_custom_call.1} parent=11 // pred_check
          %p277 = pneg %p105
        $region18: #{tpu_custom_call.1} parent=11 // pred_check_branch
          %279 = sbr.rel (%p277) target = $region20
        $region19: #{tpu_custom_call.1} parent=11 // pred_region
          _
        $region20: #{tpu_custom_call.1} parent=11 // pred_fallthru
          _
        // Predicated region
        $region21: #{tpu_custom_call.1} parent=11 // pred_check
          %p280 = pneg %p126
        $region22: #{tpu_custom_call.1} parent=11 // pred_check_branch
          %282 = sbr.rel (%p280) target = $region24
        $region23: #{tpu_custom_call.1} parent=11 // pred_region
          _
        $region24: #{tpu_custom_call.1} parent=11 // pred_fallthru
          _
        // Predicated region
        $region25: #{tpu_custom_call.1} parent=11 // pred_check
          %p283 = pneg %p147
        $region26: #{tpu_custom_call.1} parent=11 // pred_check_branch
          %285 = sbr.rel (%p283) target = $region28
        $region27: #{tpu_custom_call.1} parent=11 // pred_region
          _
        $region28: #{tpu_custom_call.1} parent=11 // pred_fallthru
          _
        // Predicated region
        $region29: #{tpu_custom_call.1} parent=11 // pred_check
          %p286 = pneg %p168
        $region30: #{tpu_custom_call.1} parent=11 // pred_check_branch
          %288 = sbr.rel (%p286) target = $region32
        $region31: #{tpu_custom_call.1} parent=11 // pred_region
          _
        $region32: #{tpu_custom_call.1} parent=11 // pred_fallthru
          _
        // Predicated region
        $region33: #{tpu_custom_call.1} parent=11 // pred_check
          %p289 = pneg %p189
        $region34: #{tpu_custom_call.1} parent=11 // pred_check_branch
          %291 = sbr.rel (%p289) target = $region36
        $region35: #{tpu_custom_call.1} parent=11 // pred_region
          _
        $region36: #{tpu_custom_call.1} parent=11 // pred_fallthru
          _
        // Predicated region
        $region37: #{tpu_custom_call.1} parent=11 // pred_check
          %p292 = pneg %p210
        $region38: #{tpu_custom_call.1} parent=11 // pred_check_branch
          %294 = sbr.rel (%p292) target = $region40
        $region39: #{tpu_custom_call.1} parent=11 // pred_region
          _
        $region40: #{tpu_custom_call.1} parent=11 // pred_fallthru
          _
        // Predicated region
        $region41: #{tpu_custom_call.1} parent=11 // pred_check
          %p295 = pneg %p231
        $region42: #{tpu_custom_call.1} parent=11 // pred_check_branch
          %297 = sbr.rel (%p295) target = $region44
        $region43: #{tpu_custom_call.1} parent=11 // pred_region
          _
        $region44: #{tpu_custom_call.1} parent=11 // pred_fallthru
          _
      $region12: #{tpu_custom_call.1} parent=5 // pred_fallthru
        _
      %p298 = scmp.lt.s32.totalorder %s23, 2
      // Predicated region
      $region45: #{tpu_custom_call.1} parent=5 // pred_check
        %p299 = pneg %p298
      $region46: #{tpu_custom_call.1} parent=5 // pred_check_branch
        %301 = sbr.rel (%p299) target = $region48
      $region47: #{tpu_custom_call.1} parent=5 // pred_region
        // Predicated region
        $region49: #{tpu_custom_call.1} parent=47 // pred_check
          %p302 = pneg %p57
        $region50: #{tpu_custom_call.1} parent=47 // pred_check_branch
          %304 = sbr.rel (%p302) target = $region52
        $region51: #{tpu_custom_call.1} parent=47 // pred_region
          %s305 = sand.u32 %s47, 1
          %s306 = scalar_lea.sflag [#allocation4], %s305
          %s307 = sand.u32 %s47, 1
          %s308 = smul.addr %s307, 256
          %s309 = scalar_lea.vmem [#allocation3], %s308
          %s310 = smul.u32 4, %s31
          %312 = vsyncadd %s306, 0
          %s313 = smul.addr %s30, 64
          %s314 = sadd.s32 %s310, %s313
          %s315 = smul.addr %s314, 4
          %s316 = scalar_lea.hbm %s0, %s315
          %s317 = sshll.u32 %s316, 4
          %s318 = int_to_ptr.hbm [resolvable:$true] %s317
          %s319 = sshll.u32 %s309, 4
          %s320 = int_to_ptr.vmem [resolvable:$true] %s319
          %325 = dma.hbm_to_vmem [thread:$0]  %s318, 4096, %s320, %s306, 256, 256, 16
        $region52: #{tpu_custom_call.1} parent=47 // pred_fallthru
          _
      $region48: #{tpu_custom_call.1} parent=5 // pred_fallthru
        _
      %p326 = scmp.le.s32.totalorder 1, %s23
      %p327 = scmp.lt.s32.totalorder %s23, 3
      %p328 = pnand %p326, %p327
      %p329 = pneg %p328
      // Predicated region
      $region53: #{tpu_custom_call.1} parent=5 // pred_check
        _
      $region54: #{tpu_custom_call.1} parent=5 // pred_check_branch
        %331 = sbr.rel (%p328) target = $region56
      $region55: #{tpu_custom_call.1} parent=5 // pred_region
        %s332 = ssub.s32 %s23, 1
        %s333 = sand.u32 %s50, 1
        %s334 = scalar_lea.sflag [#allocation4], %s333
        %s335 = sand.u32 %s50, 1
        %s336 = smul.addr %s335, 256
        %s337 = scalar_lea.vmem [#allocation3], %s336
        // Predicated region
        $region57: #{tpu_custom_call.1} parent=55 // pred_check
          %p338 = pneg %p63
        $region58: #{tpu_custom_call.1} parent=55 // pred_check_branch
          %340 = sbr.rel (%p338) target = $region60
        $region59: #{tpu_custom_call.1} parent=55 // pred_region
          %342 = dma.done %s334, 4096
        $region60: #{tpu_custom_call.1} parent=55 // pred_fallthru
          _
        %s343 = sand.u32 %s50, 1
        %s344 = scalar_lea.sflag [#allocation4], %s343
        %s345 = sand.u32 %s50, 1
        %s346 = smul.addr %s345, 256
        %s347 = scalar_lea.vmem [#allocation3], %s346
        %p348 = pneg %p63
        %p349 = pneg %p60
        %p350 = pneg %p84
        %p351 = pneg %p81
        %p352 = pneg %p105
        %p353 = pneg %p102
        %p354 = pneg %p126
        %p355 = pneg %p123
        %p356 = pneg %p147
        %p357 = pneg %p144
        %p358 = pneg %p168
        %p359 = pneg %p165
        %p360 = pneg %p189
        %p361 = pneg %p186
        %p362 = pneg %p210
        %p363 = pneg %p207
        %p364 = pneg %p231
        %p365 = pneg %p228
        %p366 = pneg %p259
        %p367 = pneg %p256
        %s368 = sand.u32 %s246, 1
        %s369 = scalar_lea.sflag [#allocation5], %s368
        %s370 = sand.u32 %s246, 1
        %s371 = smul.addr %s370, 4
        %s372 = scalar_lea.vmem [#allocation6], %s371
        %s373 = smul.u32 4, %s33
        %s374 = smul.u32 4, %s33
        %v376 = vld [vmem:[%s337] sm:$0xff]
        %v377 = vld [vmem:[%s337 + $0x8] sm:$0xff]
        %v378 = vld [vmem:[%s337 + $0x10] sm:$0xff]
        %v379 = vld [vmem:[%s337 + $0x18] sm:$0xff]
        %v380 = vld [vmem:[%s337 + $0x20] sm:$0xff]
        %v381 = vld [vmem:[%s337 + $0x28] sm:$0xff]
        %v382 = vld [vmem:[%s337 + $0x30] sm:$0xff]
        %v383 = vld [vmem:[%s337 + $0x38] sm:$0xff]
        %v384 = vld [vmem:[%s337 + $0x40] sm:$0xff]
        %v385 = vld [vmem:[%s337 + $0x48] sm:$0xff]
        %v386 = vld [vmem:[%s337 + $0x50] sm:$0xff]
        %v387 = vld [vmem:[%s337 + $0x58] sm:$0xff]
        %v388 = vld [vmem:[%s337 + $0x60] sm:$0xff]
        %v389 = vld [vmem:[%s337 + $0x68] sm:$0xff]
        %v390 = vld [vmem:[%s337 + $0x70] sm:$0xff]
        %v391 = vld [vmem:[%s337 + $0x78] sm:$0xff]
        %v392 = vld [vmem:[%s337 + $0x80] sm:$0xff]
        %v393 = vld [vmem:[%s337 + $0x88] sm:$0xff]
        %v394 = vld [vmem:[%s337 + $0x90] sm:$0xff]
        %v395 = vld [vmem:[%s337 + $0x98] sm:$0xff]
        %v396 = vld [vmem:[%s337 + $0xa0] sm:$0xff]
        %v397 = vld [vmem:[%s337 + $0xa8] sm:$0xff]
        %v398 = vld [vmem:[%s337 + $0xb0] sm:$0xff]
        %v399 = vld [vmem:[%s337 + $0xb8] sm:$0xff]
        %v400 = vld [vmem:[%s337 + $0xc0] sm:$0xff]
        %v401 = vld [vmem:[%s337 + $0xc8] sm:$0xff]
        %v402 = vld [vmem:[%s337 + $0xd0] sm:$0xff]
        %v403 = vld [vmem:[%s337 + $0xd8] sm:$0xff]
        %v404 = vld [vmem:[%s337 + $0xe0] sm:$0xff]
        %v405 = vld [vmem:[%s337 + $0xe8] sm:$0xff]
        %v406 = vld [vmem:[%s337 + $0xf0] sm:$0xff]
        %v407 = vld [vmem:[%s337 + $0xf8] sm:$0xff]
        %v408 = vld [vmem:[%s1] sm:$0xf]
        %v409 = vld [vmem:[%s1 + $0x4] sm:$0xf]
        %v410 = vld [vmem:[%s1 + $0x8] sm:$0xf]
        %v411 = vld [vmem:[%s1 + $0xc] sm:$0xf]
        %v412 = vld [vmem:[%s1 + $0x10] sm:$0xf]
        %v413 = vld [vmem:[%s1 + $0x14] sm:$0xf]
        %v414 = vld [vmem:[%s1 + $0x18] sm:$0xf]
        %v415 = vld [vmem:[%s1 + $0x1c] sm:$0xf]
        %v416 = vld [vmem:[%s2] sm:$0xff]
        %v417 = vld [vmem:[%s2 + $0x8] sm:$0xff]
        %v418 = vld [vmem:[%s2 + $0x10] sm:$0xff]
        %v419 = vld [vmem:[%s2 + $0x18] sm:$0xff]
        %v420 = vld [vmem:[%s2 + $0x20] sm:$0xff]
        %v421 = vld [vmem:[%s2 + $0x28] sm:$0xff]
        %v422 = vld [vmem:[%s2 + $0x30] sm:$0xff]
        %v423 = vld [vmem:[%s2 + $0x38] sm:$0xff]
        %425 = vset.pattern.permute.xlu0 0
        %426 = vperm.xlu0 %425, %v416
        %v427 = vpop.permute.xlu0 %426
        %430 = vset.pattern.permute.xlu0 0
        %431 = vperm.xlu0 %430, %v417
        %v432 = vpop.permute.xlu0 %431
        %435 = vset.pattern.permute.xlu0 0
        %436 = vperm.xlu0 %435, %v418
        %v437 = vpop.permute.xlu0 %436
        %440 = vset.pattern.permute.xlu0 0
        %441 = vperm.xlu0 %440, %v419
        %v442 = vpop.permute.xlu0 %441
        %445 = vset.pattern.permute.xlu0 0
        %446 = vperm.xlu0 %445, %v420
        %v447 = vpop.permute.xlu0 %446
        %450 = vset.pattern.permute.xlu0 0
        %451 = vperm.xlu0 %450, %v421
        %v452 = vpop.permute.xlu0 %451
        %455 = vset.pattern.permute.xlu0 0
        %456 = vperm.xlu0 %455, %v422
        %v457 = vpop.permute.xlu0 %456
        %460 = vset.pattern.permute.xlu0 0
        %461 = vperm.xlu0 %460, %v423
        %v462 = vpop.permute.xlu0 %461
        %v472 = vunpack.c.l.b16 %v408
        %v473 = vunpack.c.l.b16 %v409
        %v474 = vunpack.c.l.b16 %v410
        %v475 = vunpack.c.l.b16 %v411
        %v476 = vunpack.c.l.b16 %v412
        %v477 = vunpack.c.l.b16 %v413
        %v478 = vunpack.c.l.b16 %v414
        %v479 = vunpack.c.l.b16 %v415
        %v480 = vpack.c.b16 %v473, %v472
        %v481 = vpack.c.b16 %v475, %v474
        %v482 = vpack.c.b16 %v477, %v476
        %v483 = vpack.c.b16 %v479, %v478
        %v520 = vunpack.c.l.b16 %v376
        %v521 = vunpack.c.h.b16 %v376
        %v522 = vunpack.c.l.b16 %v377
        %v523 = vunpack.c.h.b16 %v377
        %v524 = vunpack.c.l.b16 %v378
        %v525 = vunpack.c.h.b16 %v378
        %v526 = vunpack.c.l.b16 %v379
        %v527 = vunpack.c.h.b16 %v379
        %v528 = vunpack.c.l.b16 %v380
        %v529 = vunpack.c.h.b16 %v380
        %v530 = vunpack.c.l.b16 %v381
        %v531 = vunpack.c.h.b16 %v381
        %v532 = vunpack.c.l.b16 %v382
        %v533 = vunpack.c.h.b16 %v382
        %v534 = vunpack.c.l.b16 %v383
        %v535 = vunpack.c.h.b16 %v383
        %v536 = vunpack.c.l.b16 %v384
        %v537 = vunpack.c.h.b16 %v384
        %v538 = vunpack.c.l.b16 %v385
        %v539 = vunpack.c.h.b16 %v385
        %v540 = vunpack.c.l.b16 %v386
        %v541 = vunpack.c.h.b16 %v386
        %v542 = vunpack.c.l.b16 %v387
        %v543 = vunpack.c.h.b16 %v387
        %v544 = vunpack.c.l.b16 %v388
        %v545 = vunpack.c.h.b16 %v388
        %v546 = vunpack.c.l.b16 %v389
        %v547 = vunpack.c.h.b16 %v389
        %v548 = vunpack.c.l.b16 %v390
        %v549 = vunpack.c.h.b16 %v390
        %v550 = vunpack.c.l.b16 %v391
        %v551 = vunpack.c.h.b16 %v391
        %v552 = vunpack.c.l.b16 %v392
        %v553 = vunpack.c.h.b16 %v392
        %v554 = vunpack.c.l.b16 %v393
        %v555 = vunpack.c.h.b16 %v393
        %v556 = vunpack.c.l.b16 %v394
        %v557 = vunpack.c.h.b16 %v394
        %v558 = vunpack.c.l.b16 %v395
        %v559 = vunpack.c.h.b16 %v395
        %v560 = vunpack.c.l.b16 %v396
        %v561 = vunpack.c.h.b16 %v396
        %v562 = vunpack.c.l.b16 %v397
        %v563 = vunpack.c.h.b16 %v397
        %v564 = vunpack.c.l.b16 %v398
        %v565 = vunpack.c.h.b16 %v398
        %v566 = vunpack.c.l.b16 %v399
        %v567 = vunpack.c.h.b16 %v399
        %v568 = vunpack.c.l.b16 %v400
        %v569 = vunpack.c.h.b16 %v400
        %v570 = vunpack.c.l.b16 %v401
        %v571 = vunpack.c.h.b16 %v401
        %v572 = vunpack.c.l.b16 %v402
        %v573 = vunpack.c.h.b16 %v402
        %v574 = vunpack.c.l.b16 %v403
        %v575 = vunpack.c.h.b16 %v403
        %v576 = vunpack.c.l.b16 %v404
        %v577 = vunpack.c.h.b16 %v404
        %v578 = vunpack.c.l.b16 %v405
        %v579 = vunpack.c.h.b16 %v405
        %v580 = vunpack.c.l.b16 %v406
        %v581 = vunpack.c.h.b16 %v406
        %v582 = vunpack.c.l.b16 %v407
        %v583 = vunpack.c.h.b16 %v407
        %v584 = vpack.c.b16 %v524, %v520
        %v585 = vpack.c.b16 %v525, %v521
        %v586 = vpack.c.b16 %v526, %v522
        %v587 = vpack.c.b16 %v527, %v523
        %v588 = vpack.c.b16 %v532, %v528
        %v589 = vpack.c.b16 %v533, %v529
        %v590 = vpack.c.b16 %v534, %v530
        %v591 = vpack.c.b16 %v535, %v531
        %v592 = vpack.c.b16 %v540, %v536
        %v593 = vpack.c.b16 %v541, %v537
        %v594 = vpack.c.b16 %v542, %v538
        %v595 = vpack.c.b16 %v543, %v539
        %v596 = vpack.c.b16 %v548, %v544
        %v597 = vpack.c.b16 %v549, %v545
        %v598 = vpack.c.b16 %v550, %v546
        %v599 = vpack.c.b16 %v551, %v547
        %v600 = vpack.c.b16 %v556, %v552
        %v601 = vpack.c.b16 %v557, %v553
        %v602 = vpack.c.b16 %v558, %v554
        %v603 = vpack.c.b16 %v559, %v555
        %v604 = vpack.c.b16 %v564, %v560
        %v605 = vpack.c.b16 %v565, %v561
        %v606 = vpack.c.b16 %v566, %v562
        %v607 = vpack.c.b16 %v567, %v563
        %v608 = vpack.c.b16 %v572, %v568
        %v609 = vpack.c.b16 %v573, %v569
        %v610 = vpack.c.b16 %v574, %v570
        %v611 = vpack.c.b16 %v575, %v571
        %v612 = vpack.c.b16 %v580, %v576
        %v613 = vpack.c.b16 %v581, %v577
        %v614 = vpack.c.b16 %v582, %v578
        %v615 = vpack.c.b16 %v583, %v579
        %648 = vmatpush.bf16.msra.mxu0 %v612
        %649 = vmatpush.bf16.msra.mxu0 %v608
        %650 = vmatpush.bf16.msra.mxu0 %v604
        %651 = vmatpush.bf16.msra.mxu0 %v600
        %652 = vmatpush.bf16.msra.mxu0 %v596
        %653 = vmatpush.bf16.msra.mxu0 %v592
        %654 = vmatpush.bf16.msra.mxu0 %v588
        %655 = vmatpush.bf16.msra.mxu0 %v584
        %656 = vmatmul.bf16.gmra.mxu0 %v480
        %v657 = vpop.f32.mrf.mxu0
        %v658 = vadd.f32 %v427, %v657
        %v659 = vpop.f32.mrf.mxu0
        %v660 = vadd.f32 %v432, %v659
        %661 = vmatmul.bf16.gmra.mxu0 %v481
        %v662 = vpop.f32.mrf.mxu0
        %v663 = vadd.f32 %v437, %v662
        %v664 = vpop.f32.mrf.mxu0
        %v665 = vadd.f32 %v442, %v664
        %666 = vmatmul.bf16.gmra.mxu0 %v482
        %v667 = vpop.f32.mrf.mxu0
        %v668 = vadd.f32 %v447, %v667
        %v669 = vpop.f32.mrf.mxu0
        %v670 = vadd.f32 %v452, %v669
        %671 = vmatmul.bf16.gmra.mxu0 %v483
        %v672 = vpop.f32.mrf.mxu0
        %v673 = vadd.f32 %v457, %v672
        %v674 = vpop.f32.mrf.mxu0
        %v675 = vadd.f32 %v462, %v674
        %676 = vdwg.mxu0
        %677 = vmatpush.bf16.msra.mxu0 %v613
        %678 = vmatpush.bf16.msra.mxu0 %v609
        %679 = vmatpush.bf16.msra.mxu0 %v605
        %680 = vmatpush.bf16.msra.mxu0 %v601
        %681 = vmatpush.bf16.msra.mxu0 %v597
        %682 = vmatpush.bf16.msra.mxu0 %v593
        %683 = vmatpush.bf16.msra.mxu0 %v589
        %684 = vmatpush.bf16.msra.mxu0 %v585
        %685 = vmatmul.bf16.gmra.mxu0 %v480
        %v686 = vpop.f32.mrf.mxu0
        %v687 = vadd.f32 %v427, %v686
        %v688 = vpop.f32.mrf.mxu0
        %v689 = vadd.f32 %v432, %v688
        %690 = vmatmul.bf16.gmra.mxu0 %v481
        %v691 = vpop.f32.mrf.mxu0
        %v692 = vadd.f32 %v437, %v691
        %v693 = vpop.f32.mrf.mxu0
        %v694 = vadd.f32 %v442, %v693
        %695 = vmatmul.bf16.gmra.mxu0 %v482
        %v696 = vpop.f32.mrf.mxu0
        %v697 = vadd.f32 %v447, %v696
        %v698 = vpop.f32.mrf.mxu0
        %v699 = vadd.f32 %v452, %v698
        %700 = vmatmul.bf16.gmra.mxu0 %v483
        %v701 = vpop.f32.mrf.mxu0
        %v702 = vadd.f32 %v457, %v701
        %v703 = vpop.f32.mrf.mxu0
        %v704 = vadd.f32 %v462, %v703
        %705 = vdwg.mxu0
        %706 = vmatpush.bf16.msra.mxu0 %v614
        %707 = vmatpush.bf16.msra.mxu0 %v610
        %708 = vmatpush.bf16.msra.mxu0 %v606
        %709 = vmatpush.bf16.msra.mxu0 %v602
        %710 = vmatpush.bf16.msra.mxu0 %v598
        %711 = vmatpush.bf16.msra.mxu0 %v594
        %712 = vmatpush.bf16.msra.mxu0 %v590
        %713 = vmatpush.bf16.msra.mxu0 %v586
        %714 = vmatmul.bf16.gmra.mxu0 %v480
        %v715 = vpop.f32.mrf.mxu0
        %v716 = vadd.f32 %v427, %v715
        %v717 = vpop.f32.mrf.mxu0
        %v718 = vadd.f32 %v432, %v717
        %719 = vmatmul.bf16.gmra.mxu0 %v481
        %v720 = vpop.f32.mrf.mxu0
        %v721 = vadd.f32 %v437, %v720
        %v722 = vpop.f32.mrf.mxu0
        %v723 = vadd.f32 %v442, %v722
        %724 = vmatmul.bf16.gmra.mxu0 %v482
        %v725 = vpop.f32.mrf.mxu0
        %v726 = vadd.f32 %v447, %v725
        %v727 = vpop.f32.mrf.mxu0
        %v728 = vadd.f32 %v452, %v727
        %729 = vmatmul.bf16.gmra.mxu0 %v483
        %v730 = vpop.f32.mrf.mxu0
        %v731 = vadd.f32 %v457, %v730
        %v732 = vpop.f32.mrf.mxu0
        %v733 = vadd.f32 %v462, %v732
        %734 = vdwg.mxu0
        %735 = vmatpush.bf16.msra.mxu0 %v615
        %736 = vmatpush.bf16.msra.mxu0 %v611
        %737 = vmatpush.bf16.msra.mxu0 %v607
        %738 = vmatpush.bf16.msra.mxu0 %v603
        %739 = vmatpush.bf16.msra.mxu0 %v599
        %740 = vmatpush.bf16.msra.mxu0 %v595
        %741 = vmatpush.bf16.msra.mxu0 %v591
        %742 = vmatpush.bf16.msra.mxu0 %v587
        %743 = vmatmul.bf16.gmra.mxu0 %v480
        %v744 = vpop.f32.mrf.mxu0
        %v745 = vadd.f32 %v427, %v744
        %v746 = vpop.f32.mrf.mxu0
        %v747 = vadd.f32 %v432, %v746
        %748 = vmatmul.bf16.gmra.mxu0 %v481
        %v749 = vpop.f32.mrf.mxu0
        %v750 = vadd.f32 %v437, %v749
        %v751 = vpop.f32.mrf.mxu0
        %v752 = vadd.f32 %v442, %v751
        %753 = vmatmul.bf16.gmra.mxu0 %v482
        %v754 = vpop.f32.mrf.mxu0
        %v755 = vadd.f32 %v447, %v754
        %v756 = vpop.f32.mrf.mxu0
        %v757 = vadd.f32 %v452, %v756
        %758 = vmatmul.bf16.gmra.mxu0 %v483
        %v759 = vpop.f32.mrf.mxu0
        %v760 = vadd.f32 %v457, %v759
        %v761 = vpop.f32.mrf.mxu0
        %v762 = vadd.f32 %v462, %v761
        %763 = vdwg.mxu0
        %v764 = vmax.f32 %v658, 0.0
        %v765 = vmax.f32 %v687, 0.0
        %v766 = vmax.f32 %v716, 0.0
        %v767 = vmax.f32 %v745, 0.0
        %v768 = vmax.f32 %v660, 0.0
        %v769 = vmax.f32 %v689, 0.0
        %v770 = vmax.f32 %v718, 0.0
        %v771 = vmax.f32 %v747, 0.0
        %v772 = vmax.f32 %v663, 0.0
        %v773 = vmax.f32 %v692, 0.0
        %v774 = vmax.f32 %v721, 0.0
        %v775 = vmax.f32 %v750, 0.0
        %v776 = vmax.f32 %v665, 0.0
        %v777 = vmax.f32 %v694, 0.0
        %v778 = vmax.f32 %v723, 0.0
        %v779 = vmax.f32 %v752, 0.0
        %v780 = vmax.f32 %v668, 0.0
        %v781 = vmax.f32 %v697, 0.0
        %v782 = vmax.f32 %v726, 0.0
        %v783 = vmax.f32 %v755, 0.0
        %v784 = vmax.f32 %v670, 0.0
        %v785 = vmax.f32 %v699, 0.0
        %v786 = vmax.f32 %v728, 0.0
        %v787 = vmax.f32 %v757, 0.0
        %v788 = vmax.f32 %v673, 0.0
        %v789 = vmax.f32 %v702, 0.0
        %v790 = vmax.f32 %v731, 0.0
        %v791 = vmax.f32 %v760, 0.0
        %v792 = vmax.f32 %v675, 0.0
        %v793 = vmax.f32 %v704, 0.0
        %v794 = vmax.f32 %v733, 0.0
        %v795 = vmax.f32 %v762, 0.0
        %v796 = vpack.c.bf16 %v768, %v764
        %v797 = vpack.c.bf16 %v769, %v765
        %v798 = vpack.c.bf16 %v770, %v766
        %v799 = vpack.c.bf16 %v771, %v767
        %v800 = vpack.c.bf16 %v776, %v772
        %v801 = vpack.c.bf16 %v777, %v773
        %v802 = vpack.c.bf16 %v778, %v774
        %v803 = vpack.c.bf16 %v779, %v775
        %v804 = vpack.c.bf16 %v784, %v780
        %v805 = vpack.c.bf16 %v785, %v781
        %v806 = vpack.c.bf16 %v786, %v782
        %v807 = vpack.c.bf16 %v787, %v783
        %v808 = vpack.c.bf16 %v792, %v788
        %v809 = vpack.c.bf16 %v793, %v789
        %v810 = vpack.c.bf16 %v794, %v790
        %v811 = vpack.c.bf16 %v795, %v791
        %v812 = vld [vmem:[%s3] sm:$0xf]
        %v813 = vld [vmem:[%s3 + $0x4] sm:$0xf]
        %v814 = vld [vmem:[%s3 + $0x8] sm:$0xf]
        %v815 = vld [vmem:[%s3 + $0xc] sm:$0xf]
        %v816 = vld [vmem:[%s4] sm:$0xff]
        %v817 = vld [vmem:[%s4 + $0x8] sm:$0xff]
        %v818 = vld [vmem:[%s4 + $0x10] sm:$0xff]
        %v819 = vld [vmem:[%s4 + $0x18] sm:$0xff]
        %821 = vset.pattern.permute.xlu0 0
        %822 = vperm.xlu0 %821, %v816
        %v823 = vpop.permute.xlu0 %822
        %826 = vset.pattern.permute.xlu0 0
        %827 = vperm.xlu0 %826, %v817
        %v828 = vpop.permute.xlu0 %827
        %831 = vset.pattern.permute.xlu0 0
        %832 = vperm.xlu0 %831, %v818
        %v833 = vpop.permute.xlu0 %832
        %836 = vset.pattern.permute.xlu0 0
        %837 = vperm.xlu0 %836, %v819
        %v838 = vpop.permute.xlu0 %837
        %v844 = vunpack.c.l.b16 %v812
        %v845 = vunpack.c.l.b16 %v813
        %v846 = vunpack.c.l.b16 %v814
        %v847 = vunpack.c.l.b16 %v815
        %v848 = vpack.c.b16 %v845, %v844
        %v849 = vpack.c.b16 %v847, %v846
        %vm850 = vcmask 523264
        %v852 = vsel %vm850, %v848, 0
        %v855 = vsel %vm850, %v849, 0
        %857 = vmatpush.bf16.msra.mxu0 0
        %858 = vmatpush.bf16.msra.mxu0 0
        %859 = vmatpush.bf16.msra.mxu0 0
        %860 = vmatpush.bf16.msra.mxu0 0
        %861 = vmatpush.bf16.msra.mxu0 %v808
        %862 = vmatpush.bf16.msra.mxu0 %v804
        %863 = vmatpush.bf16.msra.mxu0 %v800
        %864 = vmatpush.bf16.msra.mxu0 %v796
        %865 = vmatmul.bf16.gmra.mxu0 %v852
        %v866 = vpop.f32.mrf.mxu0
        %v867 = vadd.f32 %v823, %v866
        %v868 = vpop.f32.mrf.mxu0
        %v869 = vadd.f32 %v828, %v868
        %870 = vmatmul.bf16.gmra.mxu0 %v855
        %v871 = vpop.f32.mrf.mxu0
        %v872 = vadd.f32 %v833, %v871
        %v873 = vpop.f32.mrf.mxu0
        %v874 = vadd.f32 %v838, %v873
        %875 = vdwg.mxu0
        %876 = vmatpush.bf16.msra.mxu0 0
        %877 = vmatpush.bf16.msra.mxu0 0
        %878 = vmatpush.bf16.msra.mxu0 0
        %879 = vmatpush.bf16.msra.mxu0 0
        %880 = vmatpush.bf16.msra.mxu0 %v809
        %881 = vmatpush.bf16.msra.mxu0 %v805
        %882 = vmatpush.bf16.msra.mxu0 %v801
        %883 = vmatpush.bf16.msra.mxu0 %v797
        %884 = vmatmul.bf16.gmra.mxu0 %v852
        %v885 = vpop.f32.mrf.mxu0
        %v886 = vadd.f32 %v823, %v885
        %v887 = vpop.f32.mrf.mxu0
        %v888 = vadd.f32 %v828, %v887
        %889 = vmatmul.bf16.gmra.mxu0 %v855
        %v890 = vpop.f32.mrf.mxu0
        %v891 = vadd.f32 %v833, %v890
        %v892 = vpop.f32.mrf.mxu0
        %v893 = vadd.f32 %v838, %v892
        %894 = vdwg.mxu0
        %895 = vmatpush.bf16.msra.mxu0 0
        %896 = vmatpush.bf16.msra.mxu0 0
        %897 = vmatpush.bf16.msra.mxu0 0
        %898 = vmatpush.bf16.msra.mxu0 0
        %899 = vmatpush.bf16.msra.mxu0 %v810
        %900 = vmatpush.bf16.msra.mxu0 %v806
        %901 = vmatpush.bf16.msra.mxu0 %v802
        %902 = vmatpush.bf16.msra.mxu0 %v798
        %903 = vmatmul.bf16.gmra.mxu0 %v852
        %v904 = vpop.f32.mrf.mxu0
        %v905 = vadd.f32 %v823, %v904
        %v906 = vpop.f32.mrf.mxu0
        %v907 = vadd.f32 %v828, %v906
        %908 = vmatmul.bf16.gmra.mxu0 %v855
        %v909 = vpop.f32.mrf.mxu0
        %v910 = vadd.f32 %v833, %v909
        %v911 = vpop.f32.mrf.mxu0
        %v912 = vadd.f32 %v838, %v911
        %913 = vdwg.mxu0
        %914 = vmatpush.bf16.msra.mxu0 0
        %915 = vmatpush.bf16.msra.mxu0 0
        %916 = vmatpush.bf16.msra.mxu0 0
        %917 = vmatpush.bf16.msra.mxu0 0
        %918 = vmatpush.bf16.msra.mxu0 %v811
        %919 = vmatpush.bf16.msra.mxu0 %v807
        %920 = vmatpush.bf16.msra.mxu0 %v803
        %921 = vmatpush.bf16.msra.mxu0 %v799
        %922 = vmatmul.bf16.gmra.mxu0 %v852
        %v923 = vpop.f32.mrf.mxu0
        %v924 = vadd.f32 %v823, %v923
        %v925 = vpop.f32.mrf.mxu0
        %v926 = vadd.f32 %v828, %v925
        %927 = vmatmul.bf16.gmra.mxu0 %v855
        %v928 = vpop.f32.mrf.mxu0
        %v929 = vadd.f32 %v833, %v928
        %v930 = vpop.f32.mrf.mxu0
        %v931 = vadd.f32 %v838, %v930
        %932 = vdwg.mxu0
        %v933 = vmax.f32 %v867, 0.0
        %v934 = vmax.f32 %v886, 0.0
        %v935 = vmax.f32 %v905, 0.0
        %v936 = vmax.f32 %v924, 0.0
        %v937 = vmax.f32 %v869, 0.0
        %v938 = vmax.f32 %v888, 0.0
        %v939 = vmax.f32 %v907, 0.0
        %v940 = vmax.f32 %v926, 0.0
        %v941 = vmax.f32 %v872, 0.0
        %v942 = vmax.f32 %v891, 0.0
        %v943 = vmax.f32 %v910, 0.0
        %v944 = vmax.f32 %v929, 0.0
        %v945 = vmax.f32 %v874, 0.0
        %v946 = vmax.f32 %v893, 0.0
        %v947 = vmax.f32 %v912, 0.0
        %v948 = vmax.f32 %v931, 0.0
        %v949 = vpack.c.bf16 %v937, %v933
        %v950 = vpack.c.bf16 %v938, %v934
        %v951 = vpack.c.bf16 %v939, %v935
        %v952 = vpack.c.bf16 %v940, %v936
        %v953 = vpack.c.bf16 %v945, %v941
        %v954 = vpack.c.bf16 %v946, %v942
        %v955 = vpack.c.bf16 %v947, %v943
        %v956 = vpack.c.bf16 %v948, %v944
        %v957 = vld [vmem:[%s5] sm:$0xf]
        %v958 = vld [vmem:[%s5 + $0x4] sm:$0xf]
        %v959 = vld [vmem:[%s5 + $0x8] sm:$0xf]
        %v960 = vld [vmem:[%s5 + $0xc] sm:$0xf]
        %v961 = vld [vmem:[%s6] sm:$0xff]
        %v962 = vld [vmem:[%s6 + $0x8] sm:$0xff]
        %v963 = vld [vmem:[%s6 + $0x10] sm:$0xff]
        %v964 = vld [vmem:[%s6 + $0x18] sm:$0xff]
        %966 = vset.pattern.permute.xlu0 0
        %967 = vperm.xlu0 %966, %v961
        %v968 = vpop.permute.xlu0 %967
        %971 = vset.pattern.permute.xlu0 0
        %972 = vperm.xlu0 %971, %v962
        %v973 = vpop.permute.xlu0 %972
        %976 = vset.pattern.permute.xlu0 0
        %977 = vperm.xlu0 %976, %v963
        %v978 = vpop.permute.xlu0 %977
        %981 = vset.pattern.permute.xlu0 0
        %982 = vperm.xlu0 %981, %v964
        %v983 = vpop.permute.xlu0 %982
        %v989 = vunpack.c.l.b16 %v957
        %v990 = vunpack.c.l.b16 %v958
        %v991 = vunpack.c.l.b16 %v959
        %v992 = vunpack.c.l.b16 %v960
        %v993 = vpack.c.b16 %v990, %v989
        %v994 = vpack.c.b16 %v992, %v991
        %vm995 = vcmask 261120
        %v997 = vsel %vm995, %v993, 0
        %v1000 = vsel %vm995, %v994, 0
        %1002 = vmatpush.bf16.msra.mxu0 0
        %1003 = vmatpush.bf16.msra.mxu0 0
        %1004 = vmatpush.bf16.msra.mxu0 0
        %1005 = vmatpush.bf16.msra.mxu0 0
        %1006 = vmatpush.bf16.msra.mxu0 0
        %1007 = vmatpush.bf16.msra.mxu0 0
        %1008 = vmatpush.bf16.msra.mxu0 %v953
        %1009 = vmatpush.bf16.msra.mxu0 %v949
        %1010 = vmatmul.bf16.gmra.mxu0 %v997
        %v1011 = vpop.f32.mrf.mxu0
        %v1012 = vadd.f32 %v968, %v1011
        %v1013 = vpop.f32.mrf.mxu0
        %v1014 = vadd.f32 %v973, %v1013
        %1015 = vmatmul.bf16.gmra.mxu0 %v1000
        %v1016 = vpop.f32.mrf.mxu0
        %v1017 = vadd.f32 %v978, %v1016
        %v1018 = vpop.f32.mrf.mxu0
        %v1019 = vadd.f32 %v983, %v1018
        %1020 = vdwg.mxu0
        %1021 = vmatpush.bf16.msra.mxu0 0
        %1022 = vmatpush.bf16.msra.mxu0 0
        %1023 = vmatpush.bf16.msra.mxu0 0
        %1024 = vmatpush.bf16.msra.mxu0 0
        %1025 = vmatpush.bf16.msra.mxu0 0
        %1026 = vmatpush.bf16.msra.mxu0 0
        %1027 = vmatpush.bf16.msra.mxu0 %v954
        %1028 = vmatpush.bf16.msra.mxu0 %v950
        %1029 = vmatmul.bf16.gmra.mxu0 %v997
        %v1030 = vpop.f32.mrf.mxu0
        %v1031 = vadd.f32 %v968, %v1030
        %v1032 = vpop.f32.mrf.mxu0
        %v1033 = vadd.f32 %v973, %v1032
        %1034 = vmatmul.bf16.gmra.mxu0 %v1000
        %v1035 = vpop.f32.mrf.mxu0
        %v1036 = vadd.f32 %v978, %v1035
        %v1037 = vpop.f32.mrf.mxu0
        %v1038 = vadd.f32 %v983, %v1037
        %1039 = vdwg.mxu0
        %1040 = vmatpush.bf16.msra.mxu0 0
        %1041 = vmatpush.bf16.msra.mxu0 0
        %1042 = vmatpush.bf16.msra.mxu0 0
        %1043 = vmatpush.bf16.msra.mxu0 0
        %1044 = vmatpush.bf16.msra.mxu0 0
        %1045 = vmatpush.bf16.msra.mxu0 0
        %1046 = vmatpush.bf16.msra.mxu0 %v955
        %1047 = vmatpush.bf16.msra.mxu0 %v951
        %1048 = vmatmul.bf16.gmra.mxu0 %v997
        %v1049 = vpop.f32.mrf.mxu0
        %v1050 = vadd.f32 %v968, %v1049
        %v1051 = vpop.f32.mrf.mxu0
        %v1052 = vadd.f32 %v973, %v1051
        %1053 = vmatmul.bf16.gmra.mxu0 %v1000
        %v1054 = vpop.f32.mrf.mxu0
        %v1055 = vadd.f32 %v978, %v1054
        %v1056 = vpop.f32.mrf.mxu0
        %v1057 = vadd.f32 %v983, %v1056
        %1058 = vdwg.mxu0
        %1059 = vmatpush.bf16.msra.mxu0 0
        %1060 = vmatpush.bf16.msra.mxu0 0
        %1061 = vmatpush.bf16.msra.mxu0 0
        %1062 = vmatpush.bf16.msra.mxu0 0
        %1063 = vmatpush.bf16.msra.mxu0 0
        %1064 = vmatpush.bf16.msra.mxu0 0
        %1065 = vmatpush.bf16.msra.mxu0 %v956
        %1066 = vmatpush.bf16.msra.mxu0 %v952
        %1067 = vmatmul.bf16.gmra.mxu0 %v997
        %v1068 = vpop.f32.mrf.mxu0
        %v1069 = vadd.f32 %v968, %v1068
        %v1070 = vpop.f32.mrf.mxu0
        %v1071 = vadd.f32 %v973, %v1070
        %1072 = vmatmul.bf16.gmra.mxu0 %v1000
        %v1073 = vpop.f32.mrf.mxu0
        %v1074 = vadd.f32 %v978, %v1073
        %v1075 = vpop.f32.mrf.mxu0
        %v1076 = vadd.f32 %v983, %v1075
        %1077 = vdwg.mxu0
        %v1078 = vmax.f32 %v1012, 0.0
        %v1079 = vmax.f32 %v1031, 0.0
        %v1080 = vmax.f32 %v1050, 0.0
        %v1081 = vmax.f32 %v1069, 0.0
        %v1082 = vmax.f32 %v1014, 0.0
        %v1083 = vmax.f32 %v1033, 0.0
        %v1084 = vmax.f32 %v1052, 0.0
        %v1085 = vmax.f32 %v1071, 0.0
        %v1086 = vmax.f32 %v1017, 0.0
        %v1087 = vmax.f32 %v1036, 0.0
        %v1088 = vmax.f32 %v1055, 0.0
        %v1089 = vmax.f32 %v1074, 0.0
        %v1090 = vmax.f32 %v1019, 0.0
        %v1091 = vmax.f32 %v1038, 0.0
        %v1092 = vmax.f32 %v1057, 0.0
        %v1093 = vmax.f32 %v1076, 0.0
        %v1094 = vpack.c.bf16 %v1082, %v1078
        %v1095 = vpack.c.bf16 %v1083, %v1079
        %v1096 = vpack.c.bf16 %v1084, %v1080
        %v1097 = vpack.c.bf16 %v1085, %v1081
        %v1098 = vpack.c.bf16 %v1090, %v1086
        %v1099 = vpack.c.bf16 %v1091, %v1087
        %v1100 = vpack.c.bf16 %v1092, %v1088
        %v1101 = vpack.c.bf16 %v1093, %v1089
        %v1102 = vld [vmem:[%s7] sm:$0x1]
        %v1103 = vld [vmem:[#allocation2] sm:$0x1]
        %1105 = vset.pattern.permute.xlu0 0
        %1106 = vperm.xlu0 %1105, %v1103
        %v1107 = vpop.permute.xlu0 %1106
        %v1109 = vperm.slane %v1107, 0
        %v1111 = vsel %vm995, %v1102, 0
        %1113 = vmatpush.bf16.msra.mxu0 0
        %1114 = vmatpush.bf16.msra.mxu0 0
        %1115 = vmatpush.bf16.msra.mxu0 0
        %1116 = vmatpush.bf16.msra.mxu0 0
        %1117 = vmatpush.bf16.msra.mxu0 0
        %1118 = vmatpush.bf16.msra.mxu0 0
        %1119 = vmatpush.bf16.msra.mxu0 %v1098
        %1120 = vmatpush.bf16.msra.mxu0 %v1094
        %1121 = vmatmul.bf16.gmra.mxu0 %v1111
        %v1122 = vpop.f32.mrf.mxu0
        %v1123 = vadd.f32 %v1109, %v1122
        %v1124 = vpop.f32.mrf.mxu0
        %1125 = vdwg.mxu0
        %1126 = vmatpush.bf16.msra.mxu0 0
        %1127 = vmatpush.bf16.msra.mxu0 0
        %1128 = vmatpush.bf16.msra.mxu0 0
        %1129 = vmatpush.bf16.msra.mxu0 0
        %1130 = vmatpush.bf16.msra.mxu0 0
        %1131 = vmatpush.bf16.msra.mxu0 0
        %1132 = vmatpush.bf16.msra.mxu0 %v1099
        %1133 = vmatpush.bf16.msra.mxu0 %v1095
        %1134 = vmatmul.bf16.gmra.mxu0 %v1111
        %v1135 = vpop.f32.mrf.mxu0
        %v1136 = vadd.f32 %v1109, %v1135
        %v1137 = vpop.f32.mrf.mxu0
        %1138 = vdwg.mxu0
        %1139 = vmatpush.bf16.msra.mxu0 0
        %1140 = vmatpush.bf16.msra.mxu0 0
        %1141 = vmatpush.bf16.msra.mxu0 0
        %1142 = vmatpush.bf16.msra.mxu0 0
        %1143 = vmatpush.bf16.msra.mxu0 0
        %1144 = vmatpush.bf16.msra.mxu0 0
        %1145 = vmatpush.bf16.msra.mxu0 %v1100
        %1146 = vmatpush.bf16.msra.mxu0 %v1096
        %1147 = vmatmul.bf16.gmra.mxu0 %v1111
        %v1148 = vpop.f32.mrf.mxu0
        %v1149 = vadd.f32 %v1109, %v1148
        %v1150 = vpop.f32.mrf.mxu0
        %1151 = vdwg.mxu0
        %1152 = vmatpush.bf16.msra.mxu0 0
        %1153 = vmatpush.bf16.msra.mxu0 0
        %1154 = vmatpush.bf16.msra.mxu0 0
        %1155 = vmatpush.bf16.msra.mxu0 0
        %1156 = vmatpush.bf16.msra.mxu0 0
        %1157 = vmatpush.bf16.msra.mxu0 0
        %1158 = vmatpush.bf16.msra.mxu0 %v1101
        %1159 = vmatpush.bf16.msra.mxu0 %v1097
        %1160 = vmatmul.bf16.gmra.mxu0 %v1111
        %v1161 = vpop.f32.mrf.mxu0
        %v1162 = vadd.f32 %v1109, %v1161
        %v1163 = vpop.f32.mrf.mxu0
        %1164 = vdwg.mxu0
        %v1169 = vrot.slane %v1136, 7
        %v1170 = vrot.slane %v1149, 6
        %v1171 = vrot.slane %v1162, 5
        %vm1172 = vcmask 1040384
        %v1173 = vsel %vm1172, %v1123, %v1169
        %vm1174 = vcmask 1042434
        %v1175 = vsel %vm1174, %v1170, %v1171
        %vm1176 = vcmask 1041408
        %v1177 = vsel %vm1176, %v1173, %v1175
        %v1179 = vlaneseq
        %vm1180 = vcmp.ge.s32.totalorder %v1179, 0
        %vm1181 = vcmp.lt.s32.totalorder %v1179, 512
        %vm1182 = vmand %vm1180, %vm1181
        %1183 = vst.msk [vmem:[%s372] sm:$0xf] %vm1182, %v1177
        %s1184 = sand.u32 %s246, 1
        %s1185 = scalar_lea.sflag [#allocation5], %s1184
        %s1186 = sand.u32 %s246, 1
        %s1187 = smul.addr %s1186, 4
        %s1188 = scalar_lea.vmem [#allocation6], %s1187
        // Predicated region
        $region61: #{tpu_custom_call.1} parent=55 // pred_check
          %p1189 = pneg %p256
        $region62: #{tpu_custom_call.1} parent=55 // pred_check_branch
          %1191 = sbr.rel (%p1189) target = $region64
        $region63: #{tpu_custom_call.1} parent=55 // pred_region
          %s1192 = smul.u32 4, %s33
          %1194 = vsyncadd %s1185, 0
          %s1195 = smul.addr %s32, 4
          %s1196 = sadd.s32 %s1192, %s1195
          %s1197 = scalar_lea.hbm %s9, %s1196
          %s1199 = sshll.u32 %s1188, 4
          %s1200 = int_to_ptr.vmem [resolvable:$true] %s1199
          %s1201 = sshll.u32 %s1197, 4
          %s1202 = int_to_ptr.hbm [resolvable:$true] %s1201
          %1204 = dma.vmem_to_hbm [thread:$0]  %s1200, 64, %s1202, %s1185
        $region64: #{tpu_custom_call.1} parent=55 // pred_fallthru
          _
      $region56: #{tpu_custom_call.1} parent=5 // pred_fallthru
        _
      %p1205 = scmp.le.s32.totalorder 2, %s23
      // Predicated region
      $region65: #{tpu_custom_call.1} parent=5 // pred_check
        %p1206 = pneg %p1205
      $region66: #{tpu_custom_call.1} parent=5 // pred_check_branch
        %1208 = sbr.rel (%p1206) target = $region68
      $region67: #{tpu_custom_call.1} parent=5 // pred_region
        %s1209 = ssub.s32 %s23, 2
        // Predicated region
        $region69: #{tpu_custom_call.1} parent=67 // pred_check
          %p1210 = pneg %p262
        $region70: #{tpu_custom_call.1} parent=67 // pred_check_branch
          %1212 = sbr.rel (%p1210) target = $region72
        $region71: #{tpu_custom_call.1} parent=67 // pred_region
          %s1213 = sand.u32 %s247, 1
          %s1214 = scalar_lea.sflag [#allocation5], %s1213
          %s1215 = sand.u32 %s247, 1
          %s1216 = smul.addr %s1215, 4
          %s1217 = scalar_lea.vmem [#allocation6], %s1216
          %1219 = dma.done %s1214, 64
        $region72: #{tpu_custom_call.1} parent=67 // pred_fallthru
          _
      $region68: #{tpu_custom_call.1} parent=5 // pred_fallthru
        _
    $region6: #{tpu_custom_call.1} parent=1 // loop_footer
      %s27 = sadd.s32 1, %s23
    $region7: #{tpu_custom_call.1} parent=1 // loop_footer_branch
      %22 = sbr.rel target = $region3
    $region8: #{tpu_custom_call.1} parent=1 // loop_exit
      _
    %1220 = vsyncpa [#allocation4], 1
    %s1221 = scalar_lea.sflag [#allocation4], 1
    %1222 = vsyncpa %s1221, 1
    %1223 = vsyncpa [#allocation5], 1
    %s1224 = scalar_lea.sflag [#allocation5], 1
    %1225 = vsyncpa %s1224, 1

</llo_original>
